<compile_context>
chip_gen: v7x
topology: tpu7x:2x2x1
jax: 0.10.0
libtpu: 0.0.40
codegen_flags: <defaults>
</compile_context>

<pallas_src>
import jax
import jax.numpy as jnp
from jax.experimental import pallas as pl
from jax.experimental.pallas import tpu as pltpu

EPS = 1e-5  # nn.BatchNorm2d default eps


def conv_stats_kernel(x_ref, w_ref, y_ref, stats_ref):
    # x_ref    : (1, Cin, H*W + 2*W + 2) image, flattened spatial axis with a
    #            zero halo of W+1 on each side (replaces 2-D padding).
    # w_ref    : (Cout, 9*Cin)           flattened conv weight, rows ordered
    #            (kh, kw, cin) to match the im2col below.
    # y_ref    : (1, Cout, H*W)          conv output (lane-dense).
    # stats_ref: (1, Cout, 2)            per-image per-channel [sum, sum_sq].
    Cin = x_ref.shape[1]
    HW = y_ref.shape[2]
    W = (x_ref.shape[2] - HW - 2) // 2  # halo is W+1 per side

    xf = x_ref[0]          # (Cin, HW + 2W + 2)
    w_flat = w_ref[...]    # (Cout, 9*Cin)

    # Lane index -> w coordinate; masks the horizontal taps that would wrap
    # across a row boundary in the flattened layout.
    w_idx = jax.lax.broadcasted_iota(jnp.int32, (1, HW), 1) % W

    taps = []
    for kh in range(3):
        for kw in range(3):
            start = kh * W + kw                      # static offset
            t = xf[:, start:start + HW]              # (Cin, HW) contiguous slice
            if kw == 0:
                t = jnp.where(w_idx >= 1, t, 0.0)
            elif kw == 2:
                t = jnp.where(w_idx <= W - 2, t, 0.0)
            taps.append(t)
    col = jnp.concatenate(taps, axis=0)              # (9*Cin, HW) im2col, built once

    # One fused MXU matmul, K = 9*Cin, output lane-dense over HW.
    y = jnp.dot(w_flat, col, preferred_element_type=jnp.float32)   # (Cout, HW)
    y_ref[0] = y

    # Partial BN statistics for this image (combined globally outside).
    s = jnp.sum(y, axis=1, keepdims=True)            # (Cout, 1)
    ss = jnp.sum(y * y, axis=1, keepdims=True)       # (Cout, 1)
    stats_ref[0] = jnp.concatenate([s, ss], axis=1)  # (Cout, 2)


def bn_relu_kernel(y_ref, scale_ref, shift_ref, o_ref):
    # y_ref/o_ref: (1, Cout, bhw) ; scale/shift: (Cout, 1)
    y = y_ref[0]
    o_ref[0] = jnp.maximum(y * scale_ref[...] + shift_ref[...], 0.0)


@jax.jit
def cbn_forward(x_nchw, w_oihw, bias, gamma, beta):
    """Forward pass matching PyTorch CBN.forward(x), x in NCHW (training-mode BN)."""
    N, Cin, H, W = x_nchw.shape
    Cout = w_oihw.shape[0]
    HW = H * W

    # Flatten spatial axis (free, contiguous) and add a 1-D zero halo of W+1
    # per side: a (kh, kw) conv tap then becomes a contiguous slice at offset
    # kh*W + kw inside the kernel.
    x_flat = x_nchw.reshape(N, Cin, HW).astype(jnp.float32)
    xf = jnp.pad(x_flat, ((0, 0), (0, 0), (W + 1, W + 1)))

    # (Cout, 9*Cin) weight with rows ordered (kh, kw, cin).
    w_flat = jnp.transpose(w_oihw, (0, 2, 3, 1)).reshape(Cout, 9 * Cin)
    w_flat = w_flat.astype(jnp.float32)
    # Conv bias is exactly cancelled by training-mode BN mean subtraction.
    del bias

    vmem_cap = 32 * 1024 * 1024  # explicit budget; safe on v5e/v6e/v7x

    # --- pass 1: conv + per-image BN partial sums.  Grid over N is fully
    # parallel (no cross-block accumulation), so v7x's two TensorCores split it.
    # NOTE: for very large images, additionally tile HW with a manual halo DMA;
    # grid-over-N keeps BlockSpec auto-pipelining and is enough at these sizes.
    y_conv, stats = pl.pallas_call(
        conv_stats_kernel,
        out_shape=(jax.ShapeDtypeStruct((N, Cout, HW), jnp.float32),
                   jax.ShapeDtypeStruct((N, Cout, 2), jnp.float32)),
        grid=(N,),
        in_specs=[pl.BlockSpec((1, Cin, HW + 2 * W + 2), lambda n: (n, 0, 0)),
                  pl.BlockSpec((Cout, 9 * Cin), lambda n: (0, 0))],
        out_specs=(pl.BlockSpec((1, Cout, HW), lambda n: (n, 0, 0)),
                   pl.BlockSpec((1, Cout, 2), lambda n: (n, 0, 0))),
        compiler_params=pltpu.CompilerParams(
            dimension_semantics=("parallel",),
            vmem_limit_bytes=vmem_cap),
    )(xf, w_flat)

    # --- combine partial stats (tiny, O(Cout)) and fold BN into scale/shift.
    # var = E[x^2] - mean^2 in f32 is adequate at this scale; clamp at 0.
    count = float(N * HW)
    tot = jnp.sum(stats, axis=0)                      # (Cout, 2)
    mean = tot[:, 0] / count
    var = jnp.maximum(tot[:, 1] / count - mean * mean, 0.0)
    scale = gamma.astype(jnp.float32) * jax.lax.rsqrt(var + EPS)
    shift = beta.astype(jnp.float32) - mean * scale

    # --- pass 2: normalize + ReLU as one FMA+max, tiled over (N, HW blocks),
    # written in place over the conv buffer (input/output aliased).
    bhw = 512 if HW % 512 == 0 else HW
    out_flat = pl.pallas_call(
        bn_relu_kernel,
        out_shape=jax.ShapeDtypeStruct((N, Cout, HW), jnp.float32),
        grid=(N, HW // bhw),
        in_specs=[pl.BlockSpec((1, Cout, bhw), lambda n, j: (n, 0, j)),
                  pl.BlockSpec((Cout, 1), lambda n, j: (0, 0)),
                  pl.BlockSpec((Cout, 1), lambda n, j: (0, 0))],
        out_specs=pl.BlockSpec((1, Cout, bhw), lambda n, j: (n, 0, j)),
        input_output_aliases={0: 0},
        compiler_params=pltpu.CompilerParams(
            dimension_semantics=("parallel", "parallel"),
            vmem_limit_bytes=vmem_cap),
    )(y_conv, scale.reshape(Cout, 1), shift.reshape(Cout, 1))

    return out_flat.reshape(N, Cout, H, W)  # free reshape back to NCHW


def reference_cbn(x_nchw, w_oihw, bias, gamma, beta):
    """Pure-JAX reference (lax.conv + batch-stat BN + ReLU)."""
    out = jax.lax.conv_general_dilated(
        x_nchw, w_oihw, window_strides=(1, 1), padding=((1, 1), (1, 1)),
        dimension_numbers=("NCHW", "OIHW", "NCHW"))
    out = out + bias[None, :, None, None]
    mean = jnp.mean(out, axis=(0, 2, 3), keepdims=True)
    var = jnp.var(out, axis=(0, 2, 3), keepdims=True)  # biased, like PyTorch BN fwd
    out = (out - mean) * jax.lax.rsqrt(var + EPS)
    out = out * gamma[None, :, None, None] + beta[None, :, None, None]
    return jnp.maximum(out, 0.0)


if __name__ == "__main__":
    # Small shapes consistent with the module: N=2, Cin=4, Cout=8, H=W=16.
    N, Cin, Cout, H, W = 2, 4, 8, 16, 16

    key = jax.random.PRNGKey(0)
    kx, kw_, kb = jax.random.split(key, 3)

    x = jax.random.normal(kx, (N, Cin, H, W), dtype=jnp.float32)

    # Deterministic parameter init (Conv2d-like uniform bound; BN defaults).
    fan_in = Cin * 3 * 3
    bound = 1.0 / float(fan_in) ** 0.5
    w = jax.random.uniform(kw_, (Cout, Cin, 3, 3), jnp.float32, -bound, bound)
    b = jax.random.uniform(kb, (Cout,), jnp.float32, -bound, bound)
    gamma = jnp.ones((Cout,), jnp.float32)   # BatchNorm2d weight init
    beta = jnp.zeros((Cout,), jnp.float32)   # BatchNorm2d bias init

    out = jax.block_until_ready(cbn_forward(x, w, b, gamma, beta))
    ref = jax.block_until_ready(reference_cbn(x, w, b, gamma, beta))

    assert out.shape == (N, Cout, H, W)
    assert jnp.allclose(out, ref, atol=1e-4, rtol=1e-4), "mismatch vs reference"

    print("KERNEL_OK")
</pallas_src>

<mosaic_0001>
module attributes {stable_mosaic.version = 11 : i64} {
  func.func @bn_relu_kernel(%arg0: i32, %arg1: i32, %arg2: memref<1x8x256xf32, #tpu.memory_space<vmem>>, %arg3: memref<8x1xf32, #tpu.memory_space<vmem>>, %arg4: memref<8x1xf32, #tpu.memory_space<vmem>>, %arg5: memref<1x8x256xf32, #tpu.memory_space<vmem>>) attributes {dimension_semantics = [#tpu.dimension_semantics<parallel>, #tpu.dimension_semantics<parallel>], iteration_bounds = array<i64: 2, 1>, scalar_prefetch = 0 : i64, scratch_operands = 0 : i64, tpu.core_type = #tpu.core_type<tc>, window_params = [{transform_indices = @transform_0, window_bounds = array<i64: 1, 8, 256>}, {pipeline_mode = #tpu.pipeline_mode<synchronous>, transform_indices = @transform_1, window_bounds = array<i64: 8, 1>}, {pipeline_mode = #tpu.pipeline_mode<synchronous>, transform_indices = @transform_2, window_bounds = array<i64: 8, 1>}, {transform_indices = @transform_3, window_bounds = array<i64: 1, 8, 256>}]} {
    %c0 = arith.constant 0 : index
    %c0_0 = arith.constant 0 : index
    %c0_1 = arith.constant 0 : index
    %0 = vector.load %arg2[%c0, %c0_0, %c0_1] : memref<1x8x256xf32, #tpu.memory_space<vmem>>, vector<1x8x256xf32>
    %1 = vector.shape_cast %0 : vector<1x8x256xf32> to vector<8x256xf32>
    %c0_2 = arith.constant 0 : index
    %c0_3 = arith.constant 0 : index
    %2 = vector.load %arg3[%c0_2, %c0_3] : memref<8x1xf32, #tpu.memory_space<vmem>>, vector<8x1xf32>
    %3 = vector.broadcast %2 : vector<8x1xf32> to vector<8x256xf32>
    %4 = arith.mulf %1, %3 : vector<8x256xf32>
    %c0_4 = arith.constant 0 : index
    %c0_5 = arith.constant 0 : index
    %5 = vector.load %arg4[%c0_4, %c0_5] : memref<8x1xf32, #tpu.memory_space<vmem>>, vector<8x1xf32>
    %6 = vector.broadcast %5 : vector<8x1xf32> to vector<8x256xf32>
    %7 = arith.addf %4, %6 : vector<8x256xf32>
    %cst = arith.constant 0.000000e+00 : f32
    %8 = vector.broadcast %cst : f32 to vector<8x256xf32>
    %9 = arith.maximumf %7, %8 : vector<8x256xf32>
    %c0_6 = arith.constant 0 : index
    %c0_7 = arith.constant 0 : index
    %c0_8 = arith.constant 0 : index
    %10 = vector.load %arg5[%c0_6, %c0_7, %c0_8] : memref<1x8x256xf32, #tpu.memory_space<vmem>>, vector<1x8x256xf32>
    %11 = vector.shape_cast %10 : vector<1x8x256xf32> to vector<8x256xf32>
    %12 = vector.shape_cast %9 : vector<8x256xf32> to vector<1x8x256xf32>
    tpu.vector_store %arg5[%c0_6, %c0_7, %c0_8], %12 {strides = array<i32>} : memref<1x8x256xf32, #tpu.memory_space<vmem>>, vector<1x8x256xf32>,
    return
  }
  func.func @transform_0(%arg0: i32, %arg1: i32) -> (i32, i32, i32) {
    %c0_i32 = arith.constant 0 : i32
    %c0_i32_0 = arith.constant 0 : i32
    return %arg0, %c0_i32, %arg1 : i32, i32, i32
  }
  func.func @transform_1(%arg0: i32, %arg1: i32) -> (i32, i32) {
    %c0_i32 = arith.constant 0 : i32
    %c0_i32_0 = arith.constant 0 : i32
    %c0_i32_1 = arith.constant 0 : i32
    return %c0_i32, %c0_i32_0 : i32, i32
  }
  func.func @transform_2(%arg0: i32, %arg1: i32) -> (i32, i32) {
    %c0_i32 = arith.constant 0 : i32
    %c0_i32_0 = arith.constant 0 : i32
    %c0_i32_1 = arith.constant 0 : i32
    return %c0_i32, %c0_i32_0 : i32, i32
  }
  func.func @transform_3(%arg0: i32, %arg1: i32) -> (i32, i32, i32) {
    %c0_i32 = arith.constant 0 : i32
    %c0_i32_0 = arith.constant 0 : i32
    return %arg0, %c0_i32, %arg1 : i32, i32, i32
  }
}

module attributes {stable_mosaic.version = 11 : i64} {
  func.func @conv_stats_kernel(%arg0: i32, %arg1: memref<1x4x290xf32, #tpu.memory_space<vmem>>, %arg2: memref<8x36xf32, #tpu.memory_space<vmem>>, %arg3: memref<1x8x256xf32, #tpu.memory_space<vmem>>, %arg4: memref<1x8x2xf32, #tpu.memory_space<vmem>>) attributes {dimension_semantics = [#tpu.dimension_semantics<parallel>], iteration_bounds = array<i64: 2>, scalar_prefetch = 0 : i64, scratch_operands = 0 : i64, tpu.core_type = #tpu.core_type<tc>, window_params = [{transform_indices = @transform_0, window_bounds = array<i64: 1, 4, 290>}, {pipeline_mode = #tpu.pipeline_mode<synchronous>, transform_indices = @transform_1, window_bounds = array<i64: 8, 36>}, {transform_indices = @transform_2, window_bounds = array<i64: 1, 8, 256>}, {transform_indices = @transform_3, window_bounds = array<i64: 1, 8, 2>}]} {
    %c0 = arith.constant 0 : index
    %c0_0 = arith.constant 0 : index
    %c0_1 = arith.constant 0 : index
    %0 = vector.load %arg1[%c0, %c0_0, %c0_1] : memref<1x4x290xf32, #tpu.memory_space<vmem>>, vector<1x4x290xf32>
    %1 = vector.shape_cast %0 : vector<1x4x290xf32> to vector<4x290xf32>
    %c0_2 = arith.constant 0 : index
    %c0_3 = arith.constant 0 : index
    %2 = vector.load %arg2[%c0_2, %c0_3] : memref<8x36xf32, #tpu.memory_space<vmem>>, vector<8x36xf32>
    %3 = tpu.iota {dimensions = array<i32: 1>} : vector<1x256xi32>
    %c16_i32 = arith.constant 16 : i32
    %c0_i32 = arith.constant 0 : i32
    %4 = arith.cmpi eq, %c16_i32, %c0_i32 : i32
    %c1_i32 = arith.constant 1 : i32
    %5 = arith.select %4, %c1_i32, %c16_i32 : i32
    %6 = vector.broadcast %5 : i32 to vector<1x256xi32>
    %7 = arith.remsi %3, %6 : vector<1x256xi32>
    %c0_i32_4 = arith.constant 0 : i32
    %8 = vector.broadcast %c0_i32_4 : i32 to vector<1x256xi32>
    %9 = arith.cmpi ne, %7, %8 : vector<1x256xi32>
    %c0_i32_5 = arith.constant 0 : i32
    %10 = vector.broadcast %c0_i32_5 : i32 to vector<1x256xi32>
    %11 = arith.cmpi slt, %7, %10 : vector<1x256xi32>
    %c0_i32_6 = arith.constant 0 : i32
    %12 = arith.cmpi slt, %5, %c0_i32_6 : i32
    %13 = vector.broadcast %12 : i1 to vector<1x256xi1>
    %14 = vector.broadcast %13 : vector<1x256xi1> to vector<1x256xi1>
    %15 = arith.xori %11, %14 : vector<1x256xi1>
    %16 = arith.andi %15, %9 : vector<1x256xi1>
    %17 = vector.broadcast %5 : i32 to vector<1x256xi32>
    %18 = arith.addi %7, %17 : vector<1x256xi32>
    %19 = arith.select %16, %18, %7 : vector<1x256xi1>, vector<1x256xi32>
    %20 = vector.extract_strided_slice %1 {offsets = [0, 0], sizes = [4, 256], strides = [1, 1]} : vector<4x290xf32> to vector<4x256xf32>
    %c1_i32_7 = arith.constant 1 : i32
    %21 = vector.broadcast %c1_i32_7 : i32 to vector<1x256xi32>
    %22 = arith.cmpi sge, %19, %21 : vector<1x256xi32>
    %cst = arith.constant 0.000000e+00 : f32
    %23 = vector.shape_cast %22 : vector<1x256xi1> to vector<1x256xi1>
    %24 = vector.broadcast %23 : vector<1x256xi1> to vector<4x256xi1>
    %25 = vector.broadcast %cst : f32 to vector<4x256xf32>
    %26 = arith.select %24, %20, %25 : vector<4x256xi1>, vector<4x256xf32>
    %27 = vector.extract_strided_slice %1 {offsets = [0, 1], sizes = [4, 256], strides = [1, 1]} : vector<4x290xf32> to vector<4x256xf32>
    %28 = vector.extract_strided_slice %1 {offsets = [0, 2], sizes = [4, 256], strides = [1, 1]} : vector<4x290xf32> to vector<4x256xf32>
    %c14_i32 = arith.constant 14 : i32
    %29 = vector.broadcast %c14_i32 : i32 to vector<1x256xi32>
    %30 = arith.cmpi sle, %19, %29 : vector<1x256xi32>
    %cst_8 = arith.constant 0.000000e+00 : f32
    %31 = vector.shape_cast %30 : vector<1x256xi1> to vector<1x256xi1>
    %32 = vector.broadcast %31 : vector<1x256xi1> to vector<4x256xi1>
    %33 = vector.broadcast %cst_8 : f32 to vector<4x256xf32>
    %34 = arith.select %32, %28, %33 : vector<4x256xi1>, vector<4x256xf32>
    %35 = vector.extract_strided_slice %1 {offsets = [0, 16], sizes = [4, 256], strides = [1, 1]} : vector<4x290xf32> to vector<4x256xf32>
    %c1_i32_9 = arith.constant 1 : i32
    %36 = vector.broadcast %c1_i32_9 : i32 to vector<1x256xi32>
    %37 = arith.cmpi sge, %19, %36 : vector<1x256xi32>
    %cst_10 = arith.constant 0.000000e+00 : f32
    %38 = vector.shape_cast %37 : vector<1x256xi1> to vector<1x256xi1>
    %39 = vector.broadcast %38 : vector<1x256xi1> to vector<4x256xi1>
    %40 = vector.broadcast %cst_10 : f32 to vector<4x256xf32>
    %41 = arith.select %39, %35, %40 : vector<4x256xi1>, vector<4x256xf32>
    %42 = vector.extract_strided_slice %1 {offsets = [0, 17], sizes = [4, 256], strides = [1, 1]} : vector<4x290xf32> to vector<4x256xf32>
    %43 = vector.extract_strided_slice %1 {offsets = [0, 18], sizes = [4, 256], strides = [1, 1]} : vector<4x290xf32> to vector<4x256xf32>
    %c14_i32_11 = arith.constant 14 : i32
    %44 = vector.broadcast %c14_i32_11 : i32 to vector<1x256xi32>
    %45 = arith.cmpi sle, %19, %44 : vector<1x256xi32>
    %cst_12 = arith.constant 0.000000e+00 : f32
    %46 = vector.shape_cast %45 : vector<1x256xi1> to vector<1x256xi1>
    %47 = vector.broadcast %46 : vector<1x256xi1> to vector<4x256xi1>
    %48 = vector.broadcast %cst_12 : f32 to vector<4x256xf32>
    %49 = arith.select %47, %43, %48 : vector<4x256xi1>, vector<4x256xf32>
    %50 = vector.extract_strided_slice %1 {offsets = [0, 32], sizes = [4, 256], strides = [1, 1]} : vector<4x290xf32> to vector<4x256xf32>
    %c1_i32_13 = arith.constant 1 : i32
    %51 = vector.broadcast %c1_i32_13 : i32 to vector<1x256xi32>
    %52 = arith.cmpi sge, %19, %51 : vector<1x256xi32>
    %cst_14 = arith.constant 0.000000e+00 : f32
    %53 = vector.shape_cast %52 : vector<1x256xi1> to vector<1x256xi1>
    %54 = vector.broadcast %53 : vector<1x256xi1> to vector<4x256xi1>
    %55 = vector.broadcast %cst_14 : f32 to vector<4x256xf32>
    %56 = arith.select %54, %50, %55 : vector<4x256xi1>, vector<4x256xf32>
    %57 = vector.extract_strided_slice %1 {offsets = [0, 33], sizes = [4, 256], strides = [1, 1]} : vector<4x290xf32> to vector<4x256xf32>
    %58 = vector.extract_strided_slice %1 {offsets = [0, 34], sizes = [4, 256], strides = [1, 1]} : vector<4x290xf32> to vector<4x256xf32>
    %c14_i32_15 = arith.constant 14 : i32
    %59 = vector.broadcast %c14_i32_15 : i32 to vector<1x256xi32>
    %60 = arith.cmpi sle, %19, %59 : vector<1x256xi32>
    %cst_16 = arith.constant 0.000000e+00 : f32
    %61 = vector.shape_cast %60 : vector<1x256xi1> to vector<1x256xi1>
    %62 = vector.broadcast %61 : vector<1x256xi1> to vector<4x256xi1>
    %63 = vector.broadcast %cst_16 : f32 to vector<4x256xf32>
    %64 = arith.select %62, %58, %63 : vector<4x256xi1>, vector<4x256xf32>
    %65 = tpu.concatenate %26, %27, %34, %41, %42, %49, %56, %57, %64 in 0 : vector<4x256xf32>, vector<4x256xf32>, vector<4x256xf32>, vector<4x256xf32>, vector<4x256xf32>, vector<4x256xf32>, vector<4x256xf32>, vector<4x256xf32>, vector<4x256xf32> -> vector<36x256xf32>
    %cst_17 = arith.constant dense<0.000000e+00> : vector<8x256xf32>
    %66 = tpu.matmul %2, %65, %cst_17 {dimension_numbers = #tpu.dot_dimension_numbers<[1], [0], [0], [1], [0, 0, 1, 1], [], []>} : vector<8x36xf32>, vector<36x256xf32>, vector<8x256xf32> -> vector<8x256xf32>
    %c0_18 = arith.constant 0 : index
    %c0_19 = arith.constant 0 : index
    %c0_20 = arith.constant 0 : index
    %67 = vector.load %arg3[%c0_18, %c0_19, %c0_20] : memref<1x8x256xf32, #tpu.memory_space<vmem>>, vector<1x8x256xf32>
    %68 = vector.shape_cast %67 : vector<1x8x256xf32> to vector<8x256xf32>
    %69 = vector.shape_cast %66 : vector<8x256xf32> to vector<1x8x256xf32>
    tpu.vector_store %arg3[%c0_18, %c0_19, %c0_20], %69 {strides = array<i32>} : memref<1x8x256xf32, #tpu.memory_space<vmem>>, vector<1x8x256xf32>,
    %cst_21 = arith.constant dense<0.000000e+00> : vector<8xf32>
    %70 = vector.multi_reduction <add>, %66, %cst_21 [1] : vector<8x256xf32> to vector<8xf32>
    %71 = vector.shape_cast %70 : vector<8xf32> to vector<8x1xf32>
    %72 = arith.mulf %66, %66 : vector<8x256xf32>
    %cst_22 = arith.constant dense<0.000000e+00> : vector<8xf32>
    %73 = vector.multi_reduction <add>, %72, %cst_22 [1] : vector<8x256xf32> to vector<8xf32>
    %74 = vector.shape_cast %73 : vector<8xf32> to vector<8x1xf32>
    %75 = tpu.concatenate %71, %74 in 1 : vector<8x1xf32>, vector<8x1xf32> -> vector<8x2xf32>
    %c0_23 = arith.constant 0 : index
    %c0_24 = arith.constant 0 : index
    %c0_25 = arith.constant 0 : index
    %76 = vector.load %arg4[%c0_23, %c0_24, %c0_25] : memref<1x8x2xf32, #tpu.memory_space<vmem>>, vector<1x8x2xf32>
    %77 = vector.shape_cast %76 : vector<1x8x2xf32> to vector<8x2xf32>
    %78 = vector.shape_cast %75 : vector<8x2xf32> to vector<1x8x2xf32>
    tpu.vector_store %arg4[%c0_23, %c0_24, %c0_25], %78 {strides = array<i32>} : memref<1x8x2xf32, #tpu.memory_space<vmem>>, vector<1x8x2xf32>,
    return
  }
  func.func @transform_0(%arg0: i32) -> (i32, i32, i32) {
    %c0_i32 = arith.constant 0 : i32
    %c0_i32_0 = arith.constant 0 : i32
    %c0_i32_1 = arith.constant 0 : i32
    return %arg0, %c0_i32, %c0_i32_0 : i32, i32, i32
  }
  func.func @transform_1(%arg0: i32) -> (i32, i32) {
    %c0_i32 = arith.constant 0 : i32
    %c0_i32_0 = arith.constant 0 : i32
    %c0_i32_1 = arith.constant 0 : i32
    return %c0_i32, %c0_i32_0 : i32, i32
  }
  func.func @transform_2(%arg0: i32) -> (i32, i32, i32) {
    %c0_i32 = arith.constant 0 : i32
    %c0_i32_0 = arith.constant 0 : i32
    %c0_i32_1 = arith.constant 0 : i32
    return %arg0, %c0_i32, %c0_i32_0 : i32, i32, i32
  }
  func.func @transform_3(%arg0: i32) -> (i32, i32, i32) {
    %c0_i32 = arith.constant 0 : i32
    %c0_i32_0 = arith.constant 0 : i32
    %c0_i32_1 = arith.constant 0 : i32
    return %arg0, %c0_i32, %c0_i32_0 : i32, i32, i32
  }
}

</mosaic_0001>

<llo_original>
// kernel: cbn_forward.3
$region0: #{cbn_forward.3}
  #allocation0 [shape = 'u32[]', space=smem, size = 0x4, offset = 0x4, fixed_abs, tag = 'smem constant byte address 0x4 - core index']
  #allocation1 [shape = 'u32[144,128]{1,0:T(1,128)}', space=vmem, size = 0x12000, scoped, tag = 'internal scratch']
  %s0 = inlined_call_operand.vmem [shape: f32[2,8,256], index: 0, kind: input, shape index: {}, may-alias: {0,3}]
  %s1 = inlined_call_operand.vmem [shape: f32[8,1], index: 1, kind: input, shape index: {}]
  %s2 = inlined_call_operand.vmem [shape: f32[8,1], index: 2, kind: input, shape index: {}]
  %s3 = inlined_call_operand.vmem [shape: f32[2,8,256], index: 3, kind: output, shape index: {}, may-alias: {0,3}]
  %s4 = sld [smem:[#allocation0]]
  $region45: #{cbn_forward.3} parent=0
    _
  %s6 = ssub.s32 1, %s4
  %s7 = scalar_select 0, %s6, %s4
  loop: start=0, step=1, limit=4
  $region2: #{cbn_forward.3} parent=0 // loop_pre_header
    _
  $region3: #{cbn_forward.3} parent=0 // loop_header
    %s9 = sphi 0, %s13
    %p10 = scmp.ge.s32.totalorder %s9, 4
    %s16 = sphi 0, %s28
    %s17 = sphi 0, %s24
    %s18 = sphi 0, %s16
    %s19 = sphi 0, %s17
    %s20 = sphi 0, %s18
    %s21 = sphi 0, %s19
    %s33 = sphi 0, %s35
    %s36 = sphi 0, %s33
    %s37 = sphi 0, %s36
    %s53 = sphi 0, %s37
    %s57 = sphi 0, %s57
    %s59 = sphi 0, %s57
    %s60 = sphi 0, %s59
    %s74 = sphi 0, %s60
    %s78 = sphi 0, %s78
    %s80 = sphi 0, %s78
    %s81 = sphi 0, %s80
    %s95 = sphi 0, %s81
    %s103 = sphi 0, %s105
    %s106 = sphi 0, %s103
    %s107 = sphi 0, %s106
    %s123 = sphi 0, %s107
  $region4: #{cbn_forward.3} parent=0 // loop_header_branch
    %12 = sbr.rel (%p10) target = $region8
  $region5: #{cbn_forward.3} parent=0 // loop_body
    %s14 = ssub.s32 %s9, 1
    %s15 = ssub.s32 %s9, 2
    %s22 = sadd.s32 1, %s17
    %p23 = scmp.ge.s32.totalorder %s22, 1
    %s24 = scalar_select %p23, 0, %s22
    %s25 = sadd.s32 1, %s16
    %s26 = scalar_select %p23, %s25, %s16
    %p27 = scmp.ge.s32.totalorder %s26, 2
    %s28 = scalar_select %p27, 0, %s26
    %s29 = ssub.s32 %s16, %s28
    %s30 = ssub.s32 %s17, %s24
    %s31 = sor.u32 %s29, %s30
    %p32 = scmp.eq.s32.totalorder %s31, 0
    %s34 = sadd.s32 %s33, 1
    %s35 = scalar_select %p32, %s33, %s34
    %p38 = pneg %p32
    %p39 = scmp.eq.s32.totalorder %s9, 1
    %p40 = por %p38, %p39
    %p41 = scmp.ne.s32.totalorder %s33, %s36
    %p42 = scmp.eq.s32.totalorder %s9, 0
    %p43 = por %p41, %p42
    %p44 = scmp.ne.s32.totalorder %s33, %s36
    %p45 = scmp.eq.s32.totalorder %s14, 1
    %p46 = por %p44, %p45
    %p47 = scmp.ne.s32.totalorder %s36, %s37
    %p48 = scmp.eq.s32.totalorder %s14, 0
    %p49 = por %p47, %p48
    %p50 = scmp.ne.s32.totalorder %s36, %s37
    %p51 = scmp.eq.s32.totalorder %s15, 1
    %p52 = por %p50, %p51
    %p54 = scmp.ne.s32.totalorder %s37, %s53
    %p55 = scmp.eq.s32.totalorder %s15, 0
    %p56 = por %p54, %p55
    %s58 = sadd.s32 %s57, 1
    %p61 = scmp.eq.s32.totalorder %s9, 1
    %p62 = scmp.ne.s32.totalorder %s57, %s59
    %p63 = scmp.eq.s32.totalorder %s9, 0
    %p64 = por %p62, %p63
    %p65 = scmp.ne.s32.totalorder %s57, %s59
    %p66 = scmp.eq.s32.totalorder %s14, 1
    %p67 = por %p65, %p66
    %p68 = scmp.ne.s32.totalorder %s59, %s60
    %p69 = scmp.eq.s32.totalorder %s14, 0
    %p70 = por %p68, %p69
    %p71 = scmp.ne.s32.totalorder %s59, %s60
    %p72 = scmp.eq.s32.totalorder %s15, 1
    %p73 = por %p71, %p72
    %p75 = scmp.ne.s32.totalorder %s60, %s74
    %p76 = scmp.eq.s32.totalorder %s15, 0
    %p77 = por %p75, %p76
    %s79 = sadd.s32 %s78, 1
    %p82 = scmp.eq.s32.totalorder %s9, 1
    %p83 = scmp.ne.s32.totalorder %s78, %s80
    %p84 = scmp.eq.s32.totalorder %s9, 0
    %p85 = por %p83, %p84
    %p86 = scmp.ne.s32.totalorder %s78, %s80
    %p87 = scmp.eq.s32.totalorder %s14, 1
    %p88 = por %p86, %p87
    %p89 = scmp.ne.s32.totalorder %s80, %s81
    %p90 = scmp.eq.s32.totalorder %s14, 0
    %p91 = por %p89, %p90
    %p92 = scmp.ne.s32.totalorder %s80, %s81
    %p93 = scmp.eq.s32.totalorder %s15, 1
    %p94 = por %p92, %p93
    %p96 = scmp.ne.s32.totalorder %s81, %s95
    %p97 = scmp.eq.s32.totalorder %s15, 0
    %p98 = por %p96, %p97
    %s99 = ssub.s32 %s16, %s28
    %s100 = ssub.s32 %s17, %s24
    %s101 = sor.u32 %s99, %s100
    %p102 = scmp.eq.s32.totalorder %s101, 0
    %s104 = sadd.s32 %s103, 1
    %s105 = scalar_select %p102, %s103, %s104
    %p108 = pneg %p102
    %p109 = scmp.eq.s32.totalorder %s9, 1
    %p110 = por %p108, %p109
    %p111 = scmp.ne.s32.totalorder %s103, %s106
    %p112 = scmp.eq.s32.totalorder %s9, 0
    %p113 = por %p111, %p112
    %p114 = scmp.ne.s32.totalorder %s103, %s106
    %p115 = scmp.eq.s32.totalorder %s14, 1
    %p116 = por %p114, %p115
    %p117 = scmp.ne.s32.totalorder %s106, %s107
    %p118 = scmp.eq.s32.totalorder %s14, 0
    %p119 = por %p117, %p118
    %p120 = scmp.ne.s32.totalorder %s106, %s107
    %p121 = scmp.eq.s32.totalorder %s15, 1
    %p122 = por %p120, %p121
    %p124 = scmp.ne.s32.totalorder %s107, %s123
    %p125 = scmp.eq.s32.totalorder %s15, 0
    %p126 = por %p124, %p125
    %p127 = scmp.le.s32.totalorder 1, %s9
    %p128 = scmp.lt.s32.totalorder %s9, 3
    %p129 = pnand %p127, %p128
    %p130 = pneg %p129
    // Predicated region
    $region9: #{cbn_forward.3} parent=5 // pred_check
      _
    $region10: #{cbn_forward.3} parent=5 // pred_check_branch
      %132 = sbr.rel (%p129) target = $region12
    $region11: #{cbn_forward.3} parent=5 // pred_region
      %s133 = ssub.s32 %s9, 1
      // Predicated region
      $region13: #{cbn_forward.3} parent=11 // pred_check
        %p134 = pneg %p70
      $region14: #{cbn_forward.3} parent=11 // pred_check_branch
        %136 = sbr.rel (%p134) target = $region16
      $region15: #{cbn_forward.3} parent=11 // pred_region
        _
      $region16: #{cbn_forward.3} parent=11 // pred_fallthru
        _
      // Predicated region
      $region17: #{cbn_forward.3} parent=11 // pred_check
        %p137 = pneg %p91
      $region18: #{cbn_forward.3} parent=11 // pred_check_branch
        %139 = sbr.rel (%p137) target = $region20
      $region19: #{cbn_forward.3} parent=11 // pred_region
        _
      $region20: #{cbn_forward.3} parent=11 // pred_fallthru
        _
    $region12: #{cbn_forward.3} parent=5 // pred_fallthru
      _
    %p140 = scmp.lt.s32.totalorder %s9, 2
    // Predicated region
    $region21: #{cbn_forward.3} parent=5 // pred_check
      %p141 = pneg %p140
    $region22: #{cbn_forward.3} parent=5 // pred_check_branch
      %143 = sbr.rel (%p141) target = $region24
    $region23: #{cbn_forward.3} parent=5 // pred_region
      // Predicated region
      $region25: #{cbn_forward.3} parent=23 // pred_check
        %p144 = pneg %p43
      $region26: #{cbn_forward.3} parent=23 // pred_check_branch
        %146 = sbr.rel (%p144) target = $region28
      $region27: #{cbn_forward.3} parent=23 // pred_region
        %s147 = smul.u32 2, %s17
        %p148 = scmp.lt.s32.totalorder %s16, 1
        %s149 = scalar_select %p148, %s16, 1
        %p150 = scmp.lt.s32.totalorder %s147, 1
        %s151 = scalar_select %p150, %s147, 1
        %s152 = smul.addr %s149, 2
        %s153 = sadd.s32 %s151, %s152
        %s154 = smul.addr %s153, 8
        %s155 = scalar_lea.vmem %s0, %s154
        %s156 = smul.u32 2, %s17
      $region28: #{cbn_forward.3} parent=23 // pred_fallthru
        _
    $region24: #{cbn_forward.3} parent=5 // pred_fallthru
      _
    %p157 = scmp.le.s32.totalorder 1, %s9
    %p158 = scmp.lt.s32.totalorder %s9, 3
    %p159 = pnand %p157, %p158
    %p160 = pneg %p159
    // Predicated region
    $region29: #{cbn_forward.3} parent=5 // pred_check
      _
    $region30: #{cbn_forward.3} parent=5 // pred_check_branch
      %162 = sbr.rel (%p159) target = $region32
    $region31: #{cbn_forward.3} parent=5 // pred_region
      %s163 = ssub.s32 %s9, 1
      %s164 = smul.u32 2, %s19
      %p165 = scmp.lt.s32.totalorder %s18, 1
      %s166 = scalar_select %p165, %s18, 1
      %p167 = scmp.lt.s32.totalorder %s164, 1
      %s168 = scalar_select %p167, %s164, 1
      %s169 = smul.addr %s166, 2
      %s170 = sadd.s32 %s168, %s169
      %s171 = smul.addr %s170, 8
      %s172 = scalar_lea.vmem %s0, %s171
      %p173 = pneg %p49
      %p174 = pneg %p46
      %p175 = pneg %p70
      %p176 = pneg %p67
      %p177 = pneg %p91
      %p178 = pneg %p88
      %p179 = pneg %p119
      %p180 = pneg %p116
      %s181 = smul.u32 2, %s19
      %p182 = scmp.lt.s32.totalorder %s18, 1
      %s183 = scalar_select %p182, %s18, 1
      %p184 = scmp.lt.s32.totalorder %s181, 1
      %s185 = scalar_select %p184, %s181, 1
      %s186 = smul.addr %s183, 2
      %s187 = sadd.s32 %s185, %s186
      %s188 = smul.addr %s187, 8
      %s189 = scalar_lea.vmem %s3, %s188
      %s190 = smul.u32 2, %s19
      %p191 = scmp.lt.s32.totalorder %s18, 1
      %s192 = scalar_select %p191, %s18, 1
      %p193 = scmp.lt.s32.totalorder %s190, 1
      %s194 = scalar_select %p193, %s190, 1
      %s195 = smul.addr %s192, 2
      %s196 = sadd.s32 %s194, %s195
      %s197 = smul.addr %s196, 8
      %s198 = scalar_lea.vmem %s0, %s197
      %s199 = smul.u32 2, %s19
      %s200 = smul.u32 2, %s19
      %p201 = scmp.lt.s32.totalorder %s18, 1
      %s202 = scalar_select %p201, %s18, 1
      %p203 = scmp.lt.s32.totalorder %s200, 1
      %s204 = scalar_select %p203, %s200, 1
      %s205 = smul.addr %s202, 2
      %s206 = sadd.s32 %s204, %s205
      %s207 = smul.addr %s206, 8
      %s208 = scalar_lea.vmem %s3, %s207
      %s209 = smul.u32 2, %s19
      %v210 = vld [vmem:[%s198] sm:$0xff]
      %v211 = vld [vmem:[%s198 + $0x8] sm:$0xff]
      %v212 = vld [vmem:[%s1] sm:$0xff]
      %214 = vset.pattern.permute.xlu0 0
      %215 = vperm.xlu0 %214, %v212
      %v216 = vpop.permute.xlu0 %215
      %v218 = vmul.f32 %v210, %v216
      %v219 = vmul.f32 %v211, %v216
      %v220 = vld [vmem:[%s2] sm:$0xff]
      %222 = vset.pattern.permute.xlu0 0
      %223 = vperm.xlu0 %222, %v220
      %v224 = vpop.permute.xlu0 %223
      %v226 = vadd.f32 %v218, %v224
      %v227 = vadd.f32 %v219, %v224
      %v228 = vmax.f32 %v226, 0.0
      %v229 = vmax.f32 %v227, 0.0
      %230 = vst [vmem:[%s208] sm:$0xff] %v228
      %231 = vst [vmem:[%s208 + $0x8] sm:$0xff] %v229
      %s232 = smul.u32 2, %s19
      %p233 = scmp.lt.s32.totalorder %s18, 1
      %s234 = scalar_select %p233, %s18, 1
      %p235 = scmp.lt.s32.totalorder %s232, 1
      %s236 = scalar_select %p235, %s232, 1
      %s237 = smul.addr %s234, 2
      %s238 = sadd.s32 %s236, %s237
      %s239 = smul.addr %s238, 8
      %s240 = scalar_lea.vmem %s3, %s239
      // Predicated region
      $region33: #{cbn_forward.3} parent=31 // pred_check
        %p241 = pneg %p116
      $region34: #{cbn_forward.3} parent=31 // pred_check_branch
        %243 = sbr.rel (%p241) target = $region36
      $region35: #{cbn_forward.3} parent=31 // pred_region
        %s244 = smul.u32 2, %s19
      $region36: #{cbn_forward.3} parent=31 // pred_fallthru
        _
    $region32: #{cbn_forward.3} parent=5 // pred_fallthru
      _
    %p245 = scmp.le.s32.totalorder 2, %s9
    // Predicated region
    $region37: #{cbn_forward.3} parent=5 // pred_check
      %p246 = pneg %p245
    $region38: #{cbn_forward.3} parent=5 // pred_check_branch
      %248 = sbr.rel (%p246) target = $region40
    $region39: #{cbn_forward.3} parent=5 // pred_region
      %s249 = ssub.s32 %s9, 2
      // Predicated region
      $region41: #{cbn_forward.3} parent=39 // pred_check
        %p250 = pneg %p122
      $region42: #{cbn_forward.3} parent=39 // pred_check_branch
        %252 = sbr.rel (%p250) target = $region44
      $region43: #{cbn_forward.3} parent=39 // pred_region
        %s253 = smul.u32 2, %s21
        %p254 = scmp.lt.s32.totalorder %s20, 1
        %s255 = scalar_select %p254, %s20, 1
        %p256 = scmp.lt.s32.totalorder %s253, 1
        %s257 = scalar_select %p256, %s253, 1
        %s258 = smul.addr %s255, 2
        %s259 = sadd.s32 %s257, %s258
        %s260 = smul.addr %s259, 8
        %s261 = scalar_lea.vmem %s3, %s260
      $region44: #{cbn_forward.3} parent=39 // pred_fallthru
        _
    $region40: #{cbn_forward.3} parent=5 // pred_fallthru
      _
  $region6: #{cbn_forward.3} parent=0 // loop_footer
    %s13 = sadd.s32 1, %s9
  $region7: #{cbn_forward.3} parent=0 // loop_footer_branch
    %8 = sbr.rel target = $region3
  $region8: #{cbn_forward.3} parent=0 // loop_exit
    _

// kernel: cbn_forward.2
$region0: #{cbn_forward.2}
  #allocation0 [shape = 'u32[]', space=smem, size = 0x4, offset = 0x4, fixed_abs, tag = 'smem constant byte address 0x4 - core index']
  #allocation1 [shape = 'u32[144,128]{1,0:T(1,128)}', space=vmem, size = 0x12000, scoped, tag = 'internal scratch']
  %s0 = inlined_call_operand.vmem [shape: f32[2,4,290], index: 0, kind: input, shape index: {}]
  %s1 = inlined_call_operand.vmem [shape: f32[8,36], index: 1, kind: input, shape index: {}]
  %s2 = inlined_call_operand.vmem [shape: f32[2,8,256], index: 2, kind: output, shape index: {0}]
  %s3 = inlined_call_operand.vmem [shape: f32[2,8,2], index: 3, kind: output, shape index: {1}]
  %4 = xla_tuple %s2, %s3
  %s5 = sld [smem:[#allocation0]]
  $region49: #{cbn_forward.2} parent=0
    _
  %s7 = ssub.s32 1, %s5
  %s8 = scalar_select 0, %s7, %s5
  loop: start=0, step=1, limit=4
  $region2: #{cbn_forward.2} parent=0 // loop_pre_header
    _
  $region3: #{cbn_forward.2} parent=0 // loop_header
    %s10 = sphi 0, %s14
    %p11 = scmp.ge.s32.totalorder %s10, 4
    %s20 = sphi 0, %s22
    %s23 = sphi 0, %s20
    %s24 = sphi 0, %s23
    %s40 = sphi 0, %s24
    %s44 = sphi 0, %s44
    %s46 = sphi 0, %s44
    %s47 = sphi 0, %s46
    %s61 = sphi 0, %s47
    %s67 = sphi 0, %s69
    %s70 = sphi 0, %s67
    %s71 = sphi 0, %s70
    %s87 = sphi 0, %s71
    %s93 = sphi 0, %s95
    %s96 = sphi 0, %s93
    %s97 = sphi 0, %s96
    %s113 = sphi 0, %s97
  $region4: #{cbn_forward.2} parent=0 // loop_header_branch
    %13 = sbr.rel (%p11) target = $region8
  $region5: #{cbn_forward.2} parent=0 // loop_body
    %s15 = ssub.s32 %s10, 1
    %s16 = ssub.s32 %s10, 2
    %s17 = sadd.s32 %s10, 1
    %s18 = ssub.s32 %s10, %s17
    %p19 = scmp.eq.s32.totalorder %s18, 0
    %s21 = sadd.s32 %s20, 1
    %s22 = scalar_select %p19, %s20, %s21
    %p25 = pneg %p19
    %p26 = scmp.eq.s32.totalorder %s10, 1
    %p27 = por %p25, %p26
    %p28 = scmp.ne.s32.totalorder %s20, %s23
    %p29 = scmp.eq.s32.totalorder %s10, 0
    %p30 = por %p28, %p29
    %p31 = scmp.ne.s32.totalorder %s20, %s23
    %p32 = scmp.eq.s32.totalorder %s15, 1
    %p33 = por %p31, %p32
    %p34 = scmp.ne.s32.totalorder %s23, %s24
    %p35 = scmp.eq.s32.totalorder %s15, 0
    %p36 = por %p34, %p35
    %p37 = scmp.ne.s32.totalorder %s23, %s24
    %p38 = scmp.eq.s32.totalorder %s16, 1
    %p39 = por %p37, %p38
    %p41 = scmp.ne.s32.totalorder %s24, %s40
    %p42 = scmp.eq.s32.totalorder %s16, 0
    %p43 = por %p41, %p42
    %s45 = sadd.s32 %s44, 1
    %p48 = scmp.eq.s32.totalorder %s10, 1
    %p49 = scmp.ne.s32.totalorder %s44, %s46
    %p50 = scmp.eq.s32.totalorder %s10, 0
    %p51 = por %p49, %p50
    %p52 = scmp.ne.s32.totalorder %s44, %s46
    %p53 = scmp.eq.s32.totalorder %s15, 1
    %p54 = por %p52, %p53
    %p55 = scmp.ne.s32.totalorder %s46, %s47
    %p56 = scmp.eq.s32.totalorder %s15, 0
    %p57 = por %p55, %p56
    %p58 = scmp.ne.s32.totalorder %s46, %s47
    %p59 = scmp.eq.s32.totalorder %s16, 1
    %p60 = por %p58, %p59
    %p62 = scmp.ne.s32.totalorder %s47, %s61
    %p63 = scmp.eq.s32.totalorder %s16, 0
    %p64 = por %p62, %p63
    %s65 = ssub.s32 %s10, %s17
    %p66 = scmp.eq.s32.totalorder %s65, 0
    %s68 = sadd.s32 %s67, 1
    %s69 = scalar_select %p66, %s67, %s68
    %p72 = pneg %p66
    %p73 = scmp.eq.s32.totalorder %s10, 1
    %p74 = por %p72, %p73
    %p75 = scmp.ne.s32.totalorder %s67, %s70
    %p76 = scmp.eq.s32.totalorder %s10, 0
    %p77 = por %p75, %p76
    %p78 = scmp.ne.s32.totalorder %s67, %s70
    %p79 = scmp.eq.s32.totalorder %s15, 1
    %p80 = por %p78, %p79
    %p81 = scmp.ne.s32.totalorder %s70, %s71
    %p82 = scmp.eq.s32.totalorder %s15, 0
    %p83 = por %p81, %p82
    %p84 = scmp.ne.s32.totalorder %s70, %s71
    %p85 = scmp.eq.s32.totalorder %s16, 1
    %p86 = por %p84, %p85
    %p88 = scmp.ne.s32.totalorder %s71, %s87
    %p89 = scmp.eq.s32.totalorder %s16, 0
    %p90 = por %p88, %p89
    %s91 = ssub.s32 %s10, %s17
    %p92 = scmp.eq.s32.totalorder %s91, 0
    %s94 = sadd.s32 %s93, 1
    %s95 = scalar_select %p92, %s93, %s94
    %p98 = pneg %p92
    %p99 = scmp.eq.s32.totalorder %s10, 1
    %p100 = por %p98, %p99
    %p101 = scmp.ne.s32.totalorder %s93, %s96
    %p102 = scmp.eq.s32.totalorder %s10, 0
    %p103 = por %p101, %p102
    %p104 = scmp.ne.s32.totalorder %s93, %s96
    %p105 = scmp.eq.s32.totalorder %s15, 1
    %p106 = por %p104, %p105
    %p107 = scmp.ne.s32.totalorder %s96, %s97
    %p108 = scmp.eq.s32.totalorder %s15, 0
    %p109 = por %p107, %p108
    %p110 = scmp.ne.s32.totalorder %s96, %s97
    %p111 = scmp.eq.s32.totalorder %s16, 1
    %p112 = por %p110, %p111
    %p114 = scmp.ne.s32.totalorder %s97, %s113
    %p115 = scmp.eq.s32.totalorder %s16, 0
    %p116 = por %p114, %p115
    %p117 = scmp.le.s32.totalorder 1, %s10
    %p118 = scmp.lt.s32.totalorder %s10, 3
    %p119 = pnand %p117, %p118
    %p120 = pneg %p119
    // Predicated region
    $region9: #{cbn_forward.2} parent=5 // pred_check
      _
    $region10: #{cbn_forward.2} parent=5 // pred_check_branch
      %122 = sbr.rel (%p119) target = $region12
    $region11: #{cbn_forward.2} parent=5 // pred_region
      %s123 = ssub.s32 %s10, 1
      // Predicated region
      $region13: #{cbn_forward.2} parent=11 // pred_check
        %p124 = pneg %p57
      $region14: #{cbn_forward.2} parent=11 // pred_check_branch
        %126 = sbr.rel (%p124) target = $region16
      $region15: #{cbn_forward.2} parent=11 // pred_region
        _
      $region16: #{cbn_forward.2} parent=11 // pred_fallthru
        _
    $region12: #{cbn_forward.2} parent=5 // pred_fallthru
      _
    %p127 = scmp.lt.s32.totalorder %s10, 2
    // Predicated region
    $region17: #{cbn_forward.2} parent=5 // pred_check
      %p128 = pneg %p127
    $region18: #{cbn_forward.2} parent=5 // pred_check_branch
      %130 = sbr.rel (%p128) target = $region20
    $region19: #{cbn_forward.2} parent=5 // pred_region
      // Predicated region
      $region21: #{cbn_forward.2} parent=19 // pred_check
        %p131 = pneg %p30
      $region22: #{cbn_forward.2} parent=19 // pred_check_branch
        %133 = sbr.rel (%p131) target = $region24
      $region23: #{cbn_forward.2} parent=19 // pred_region
        %p134 = scmp.lt.s32.totalorder %s10, 1
        %s135 = scalar_select %p134, %s10, 1
        %s136 = smul.addr %s135, 3
        %s137 = smul.addr %s136, 4
        %s138 = scalar_lea.vmem %s0, %s137
      $region24: #{cbn_forward.2} parent=19 // pred_fallthru
        _
    $region20: #{cbn_forward.2} parent=5 // pred_fallthru
      _
    %p139 = scmp.le.s32.totalorder 1, %s10
    %p140 = scmp.lt.s32.totalorder %s10, 3
    %p141 = pnand %p139, %p140
    %p142 = pneg %p141
    // Predicated region
    $region25: #{cbn_forward.2} parent=5 // pred_check
      _
    $region26: #{cbn_forward.2} parent=5 // pred_check_branch
      %144 = sbr.rel (%p141) target = $region28
    $region27: #{cbn_forward.2} parent=5 // pred_region
      %s145 = ssub.s32 %s10, 1
      %p146 = scmp.lt.s32.totalorder %s15, 1
      %s147 = scalar_select %p146, %s15, 1
      %s148 = smul.addr %s147, 3
      %s149 = smul.addr %s148, 4
      %s150 = scalar_lea.vmem %s0, %s149
      %p151 = pneg %p36
      %p152 = pneg %p33
      %p153 = pneg %p57
      %p154 = pneg %p54
      %p155 = pneg %p83
      %p156 = pneg %p80
      %p157 = scmp.lt.s32.totalorder %s15, 1
      %s158 = scalar_select %p157, %s15, 1
      %s159 = smul.addr %s158, 2
      %s160 = smul.addr %s159, 8
      %s161 = scalar_lea.vmem %s2, %s160
      %p162 = pneg %p109
      %p163 = pneg %p106
      %p164 = scmp.lt.s32.totalorder %s15, 1
      %s165 = scalar_select %p164, %s15, 1
      %s166 = smul.addr %s165, 8
      %s167 = scalar_lea.vmem %s3, %s166
      %p168 = scmp.lt.s32.totalorder %s15, 1
      %s169 = scalar_select %p168, %s15, 1
      %s170 = smul.addr %s169, 3
      %s171 = smul.addr %s170, 4
      %s172 = scalar_lea.vmem %s0, %s171
      %p173 = scmp.lt.s32.totalorder %s15, 1
      %s174 = scalar_select %p173, %s15, 1
      %s175 = smul.addr %s174, 2
      %s176 = smul.addr %s175, 8
      %s177 = scalar_lea.vmem %s2, %s176
      %p178 = scmp.lt.s32.totalorder %s15, 1
      %s179 = scalar_select %p178, %s15, 1
      %s180 = smul.addr %s179, 8
      %s181 = scalar_lea.vmem %s3, %s180
      %v182 = vld [vmem:[%s172] sm:$0xff]
      %v183 = vld [vmem:[%s172 + $0x8] sm:$0xf]
      %v184 = vld [vmem:[%s1] sm:$0xff]
      %v185 = vlaneseq
      %v186 = vand.u32 %v185, 127
      %v187 = vadd.s32 %v186, 128
      %vm188 = vcmp.lt.s32.totalorder %v186, 0
      %v189 = vsub.s32 0, %v186
      %v190 = vsel %vm188, %v189, %v186
      %v191 = vshrl.u32 %v190, 4
      %v192 = vand.u32 %v190, 15
      %v193 = vsub.s32 0, %v192
      %v194 = vsel %vm188, %v193, %v192
      %vm195 = vcmp.lt.s32.totalorder %v187, 0
      %v196 = vsub.s32 0, %v187
      %v197 = vsel %vm195, %v196, %v187
      %v198 = vshrl.u32 %v197, 4
      %v199 = vand.u32 %v197, 15
      %v200 = vsub.s32 0, %v199
      %v201 = vsel %vm195, %v200, %v199
      %vm202 = vcmp.ne.s32.totalorder %v194, 0
      %vm203 = vcmp.ne.s32.totalorder %v201, 0
      %vm204 = vcmp.lt.s32.totalorder %v194, 0
      %vm205 = vcmp.lt.s32.totalorder %v201, 0
      %vm206 = vmand %vm204, %vm202
      %vm207 = vmand %vm205, %vm203
      %v208 = vadd.s32 %v194, 16
      %v209 = vadd.s32 %v201, 16
      %v210 = vsel %vm206, %v208, %v194
      %v211 = vsel %vm207, %v209, %v201
      %vm212 = vcmp.ge.s32.totalorder %v210, 1
      %vm213 = vcmp.ge.s32.totalorder %v211, 1
      %v214 = vsel %vm212, 1, 0
      %v215 = vsel %vm213, 1, 0
      %vm216 = vcmp.eq.s32.totalorder %v214, 1
      %vm217 = vcmp.eq.s32.totalorder %v215, 1
      %v219 = vcombine.high %v182, %v182
      %v221 = vsel %vm216, %v182, 0.0
      %v222 = vsel %vm217, %v219, 0.0
      %vm223 = vcmp.le.s32.totalorder %v210, 14
      %vm224 = vcmp.le.s32.totalorder %v211, 14
      %v225 = vsel %vm223, 1, 0
      %v226 = vsel %vm224, 1, 0
      %vm227 = vcmp.eq.s32.totalorder %v225, 1
      %vm228 = vcmp.eq.s32.totalorder %v226, 1
      %230 = vrot.lane.b32.xlu0 %v182, 126
      %v231 = vpop.permute.xlu0 %230
      %232 = vrot.lane.b32.xlu0 %v219, 126
      %v233 = vpop.permute.xlu0 %232
      %234 = vrot.lane.b32.xlu0 %v183, 126
      %v235 = vpop.permute.xlu0 %234
      %vm236 = vcmask 1031168
      %v237 = vsel %vm236, %v231, %v233
      %v238 = vsel %vm236, %v233, %v235
      %v241 = vsel %vm227, %v237, 0.0
      %v242 = vsel %vm228, %v238, 0.0
      %243 = vrot.lane.b32.xlu0 %v182, 112
      %v244 = vpop.permute.xlu0 %243
      %245 = vrot.lane.b32.xlu0 %v219, 112
      %v246 = vpop.permute.xlu0 %245
      %247 = vrot.lane.b32.xlu0 %v183, 112
      %v248 = vpop.permute.xlu0 %247
      %vm249 = vcmask 916480
      %v250 = vsel %vm249, %v244, %v246
      %v251 = vsel %vm249, %v246, %v248
      %v254 = vsel %vm216, %v250, 0.0
      %v255 = vsel %vm217, %v251, 0.0
      %256 = vrot.lane.b32.xlu0 %v182, 110
      %v257 = vpop.permute.xlu0 %256
      %258 = vrot.lane.b32.xlu0 %v219, 110
      %v259 = vpop.permute.xlu0 %258
      %260 = vrot.lane.b32.xlu0 %v183, 110
      %v261 = vpop.permute.xlu0 %260
      %vm262 = vcmask 900096
      %v263 = vsel %vm262, %v257, %v259
      %v264 = vsel %vm262, %v259, %v261
      %v267 = vsel %vm227, %v263, 0.0
      %v268 = vsel %vm228, %v264, 0.0
      %269 = vrot.lane.b32.xlu0 %v182, 96
      %v270 = vpop.permute.xlu0 %269
      %271 = vrot.lane.b32.xlu0 %v219, 96
      %v272 = vpop.permute.xlu0 %271
      %273 = vrot.lane.b32.xlu0 %v183, 96
      %v274 = vpop.permute.xlu0 %273
      %vm275 = vcmask 785408
      %v276 = vsel %vm275, %v270, %v272
      %v277 = vsel %vm275, %v272, %v274
      %v280 = vsel %vm216, %v276, 0.0
      %v281 = vsel %vm217, %v277, 0.0
      %282 = vrot.lane.b32.xlu0 %v182, 94
      %v283 = vpop.permute.xlu0 %282
      %284 = vrot.lane.b32.xlu0 %v219, 94
      %v285 = vpop.permute.xlu0 %284
      %286 = vrot.lane.b32.xlu0 %v183, 94
      %v287 = vpop.permute.xlu0 %286
      %vm288 = vcmask 769024
      %v289 = vsel %vm288, %v283, %v285
      %v290 = vsel %vm288, %v285, %v287
      %v293 = vsel %vm227, %v289, 0.0
      %v294 = vsel %vm228, %v290, 0.0
      %v295 = vcombine.low %v182, %v182
      %v296 = vcombine.low %v183, %v183
      %297 = vrot.lane.b32.xlu0 %v295, 127
      %v298 = vpop.permute.xlu0 %297
      %299 = vrot.lane.b32.xlu0 %v182, 127
      %v300 = vpop.permute.xlu0 %299
      %301 = vrot.lane.b32.xlu0 %v296, 127
      %v302 = vpop.permute.xlu0 %301
      %vm303 = vcmask 1039360
      %v304 = vsel %vm303, %v298, %v300
      %v305 = vsel %vm303, %v300, %v302
      %v310 = vrot.slane %v254, 4
      %v311 = vrot.slane %v255, 4
      %314 = vrot.lane.b32.xlu0 %v182, 111
      %v315 = vpop.permute.xlu0 %314
      %316 = vrot.lane.b32.xlu0 %v219, 111
      %v317 = vpop.permute.xlu0 %316
      %318 = vrot.lane.b32.xlu0 %v183, 111
      %v319 = vpop.permute.xlu0 %318
      %vm320 = vcmask 908288
      %v321 = vsel %vm320, %v315, %v317
      %v322 = vsel %vm320, %v317, %v319
      %v327 = vrot.slane %v267, 4
      %v328 = vrot.slane %v268, 4
      %331 = vrot.lane.b32.xlu0 %v295, 95
      %v332 = vpop.permute.xlu0 %331
      %333 = vrot.lane.b32.xlu0 %v182, 95
      %v334 = vpop.permute.xlu0 %333
      %335 = vrot.lane.b32.xlu0 %v296, 95
      %v336 = vpop.permute.xlu0 %335
      %vm337 = vcmask 777216
      %v338 = vsel %vm337, %v332, %v334
      %v339 = vsel %vm337, %v334, %v336
      %vm342 = vcmask 1043456
      %v343 = vsel %vm342, %v221, %v304
      %v344 = vsel %vm342, %v222, %v305
      %v345 = vsel %vm342, %v241, %v310
      %v346 = vsel %vm342, %v242, %v311
      %v347 = vsel %vm342, %v321, %v327
      %v348 = vsel %vm342, %v322, %v328
      %v349 = vsel %vm342, %v280, %v338
      %v350 = vsel %vm342, %v281, %v339
      %vm351 = vcmask 293888
      %v353 = vsel %vm351, %v184, 0
      %v356 = vsel %vm342, %v293, 0
      %v359 = vsel %vm342, %v294, 0
      %361 = vmatprep.subr.mxu0 %v344
      %362 = vmatpush1.msra.mxu0 %v343
      %363 = vmatprep.subr.mxu0 %v346
      %364 = vmatpush1.msra.mxu0 %v345
      %365 = vmatprep.subr.mxu0 %v348
      %366 = vmatpush1.msra.mxu0 %v347
      %367 = vmatprep.subr.mxu0 %v350
      %368 = vmatpush1.msra.mxu0 %v349
      %369 = vmatprep.subr.mxu0 %v359
      %370 = vmatpush1.msra.mxu0 %v356
      %371 = vmatprep.subr.mxu0 0.0
      %372 = vmatpush1.msra.mxu0 0.0
      %373 = vmatprep.subr.mxu0 0.0
      %374 = vmatpush1.msra.mxu0 0.0
      %375 = vmatprep.subr.mxu0 0.0
      %376 = vmatpush1.msra.mxu0 0.0
      %377 = vmatprep.subr.mxu0 0.0
      %378 = vmatpush1.msra.mxu0 0.0
      %379 = vmatprep.subr.mxu0 0.0
      %380 = vmatpush1.msra.mxu0 0.0
      %381 = vmatprep.subr.mxu0 0.0
      %382 = vmatpush1.msra.mxu0 0.0
      %383 = vmatprep.subr.mxu0 0.0
      %384 = vmatpush1.msra.mxu0 0.0
      %385 = vmatprep.subr.mxu0 0.0
      %386 = vmatpush1.msra.mxu0 0.0
      %387 = vmatprep.subr.mxu0 0.0
      %388 = vmatpush1.msra.mxu0 0.0
      %389 = vmatprep.subr.mxu0 0.0
      %390 = vmatpush1.msra.mxu0 0.0
      %391 = vmatprep.subr.mxu0 0.0
      %392 = vmatpush1.msra.mxu0 0.0
      %393 = vmatprep.subr.mxu0 0.0
      %394 = vmatpush1.msra.mxu0 0.0
      %395 = vmatprep.subr.mxu0 0.0
      %396 = vmatpush1.msra.mxu0 0.0
      %397 = vmatprep.subr.mxu0 0.0
      %398 = vmatpush1.msra.mxu0 0.0
      %399 = vmatprep.subr.mxu0 0.0
      %400 = vmatpush1.msra.mxu0 0.0
      %401 = vmatprep.subr.mxu0 0.0
      %402 = vmatpush1.msra.mxu0 0.0
      %403 = vmatprep.subr.mxu0 0.0
      %404 = vmatpush1.msra.mxu0 0.0
      %405 = vmatprep.subr.mxu0 0.0
      %406 = vmatpush1.msra.mxu0 0.0
      %407 = vmatprep.subr.mxu0 0.0
      %408 = vmatpush1.msra.mxu0 0.0
      %409 = vmatprep.subr.mxu0 0.0
      %410 = vmatpush1.msra.mxu0 0.0
      %411 = vmatprep.subr.mxu0 0.0
      %412 = vmatpush1.msra.mxu0 0.0
      %413 = vmatprep.subr.mxu0 0.0
      %414 = vmatpush1.msra.mxu0 0.0
      %415 = vmatprep.subr.mxu0 0.0
      %416 = vmatpush1.msra.mxu0 0.0
      %417 = vmatprep.subr.mxu0 0.0
      %418 = vmatpush1.msra.mxu0 0.0
      %419 = vmatprep.subr.mxu0 0.0
      %420 = vmatpush1.msra.mxu0 0.0
      %421 = vmatprep.subr.mxu0 0.0
      %422 = vmatpush1.msra.mxu0 0.0
      %423 = vmatprep.subr.mxu0 0.0
      %424 = vmatpush1.msra.mxu0 0.0
      %425 = vmatprep.mubr.f32.mxu0 0.0
      %426 = vmatmul.mubr.f32.gmra.mrb[0].mxu0 %v353
      %v427 = vpop.f32.mrb[0].mxu0
      %v428 = vadd.f32 0.0, %v427
      %v429 = vpop.f32.mrb[0].mxu0
      %v430 = vadd.f32 0.0, %v429
      %431 = vdwg.mxu0
      %432 = vst [vmem:[%s177] sm:$0xff] %v428
      %433 = vst [vmem:[%s177 + $0x8] sm:$0xff] %v430
      %v434 = vadd.f32 %v428, %v430
      %435 = vadd.xlane.f32.xlu0 %v434
      %v436 = vpop.xlane.xlu0 %435
      %v437 = vmul.f32 %v428, %v428
      %v438 = vmul.f32 %v430, %v430
      %v439 = vadd.f32 %v437, %v438
      %440 = vadd.xlane.f32.xlu0 %v439
      %v441 = vpop.xlane.xlu0 %440
      %vm442 = vcmask 7168
      %v443 = vsel %vm442, %v436, %v441
      %vm444 = vcmask 15360
      %445 = vst.msk [vmem:[%s181] sm:$0xff] %vm444, %v443
      %p446 = scmp.lt.s32.totalorder %s15, 1
      %s447 = scalar_select %p446, %s15, 1
      %s448 = smul.addr %s447, 2
      %s449 = smul.addr %s448, 8
      %s450 = scalar_lea.vmem %s2, %s449
      %p451 = scmp.lt.s32.totalorder %s15, 1
      %s452 = scalar_select %p451, %s15, 1
      %s453 = smul.addr %s452, 8
      %s454 = scalar_lea.vmem %s3, %s453
      // Predicated region
      $region29: #{cbn_forward.2} parent=27 // pred_check
        %p455 = pneg %p80
      $region30: #{cbn_forward.2} parent=27 // pred_check_branch
        %457 = sbr.rel (%p455) target = $region32
      $region31: #{cbn_forward.2} parent=27 // pred_region
        _
      $region32: #{cbn_forward.2} parent=27 // pred_fallthru
        _
      // Predicated region
      $region33: #{cbn_forward.2} parent=27 // pred_check
        %p458 = pneg %p106
      $region34: #{cbn_forward.2} parent=27 // pred_check_branch
        %460 = sbr.rel (%p458) target = $region36
      $region35: #{cbn_forward.2} parent=27 // pred_region
        _
      $region36: #{cbn_forward.2} parent=27 // pred_fallthru
        _
    $region28: #{cbn_forward.2} parent=5 // pred_fallthru
      _
    %p461 = scmp.le.s32.totalorder 2, %s10
    // Predicated region
    $region37: #{cbn_forward.2} parent=5 // pred_check
      %p462 = pneg %p461
    $region38: #{cbn_forward.2} parent=5 // pred_check_branch
      %464 = sbr.rel (%p462) target = $region40
    $region39: #{cbn_forward.2} parent=5 // pred_region
      %s465 = ssub.s32 %s10, 2
      // Predicated region
      $region41: #{cbn_forward.2} parent=39 // pred_check
        %p466 = pneg %p86
      $region42: #{cbn_forward.2} parent=39 // pred_check_branch
        %468 = sbr.rel (%p466) target = $region44
      $region43: #{cbn_forward.2} parent=39 // pred_region
        %p469 = scmp.lt.s32.totalorder %s16, 1
        %s470 = scalar_select %p469, %s16, 1
        %s471 = smul.addr %s470, 2
        %s472 = smul.addr %s471, 8
        %s473 = scalar_lea.vmem %s2, %s472
      $region44: #{cbn_forward.2} parent=39 // pred_fallthru
        _
      // Predicated region
      $region45: #{cbn_forward.2} parent=39 // pred_check
        %p474 = pneg %p112
      $region46: #{cbn_forward.2} parent=39 // pred_check_branch
        %476 = sbr.rel (%p474) target = $region48
      $region47: #{cbn_forward.2} parent=39 // pred_region
        %p477 = scmp.lt.s32.totalorder %s16, 1
        %s478 = scalar_select %p477, %s16, 1
        %s479 = smul.addr %s478, 8
        %s480 = scalar_lea.vmem %s3, %s479
      $region48: #{cbn_forward.2} parent=39 // pred_fallthru
        _
    $region40: #{cbn_forward.2} parent=5 // pred_fallthru
      _
  $region6: #{cbn_forward.2} parent=0 // loop_footer
    %s14 = sadd.s32 1, %s10
  $region7: #{cbn_forward.2} parent=0 // loop_footer_branch
    %9 = sbr.rel target = $region3
  $region8: #{cbn_forward.2} parent=0 // loop_exit
    _

</llo_original>
